<compile_context>
chip_gen: v6e
topology: v6e:2x2x1
jax: 0.10.0
libtpu: 0.0.40
codegen_flags: <defaults>
</compile_context>

<pallas_src>
import jax
import jax.numpy as jnp
from jax.experimental import pallas as pl
from jax.experimental.pallas import tpu as pltpu

P = 128  # lane-padded feature width for every layer's output


def _packed_mlp_fwd(x, w, b):
    """Shared forward math; works on Pallas Refs (in-kernel) or jnp arrays.

    x: (B, F) input, F = observation_width (no lane padding required).
    w: (128, n_layers*128) packed, zero-padded weight slab (fp32 or bf16).
    b: (1,   n_layers*128) packed, zero-padded fp32 bias row.
    Returns (B, 128) fp32; columns >= action_count are exactly zero
    (zero weight rows/cols + ReLU(0)=0 keep the padding inert).
    """
    n_layers = w.shape[1] // P
    wdt = w.dtype
    F = x.shape[1]
    h = x[...].astype(wdt)
    # Layer 0: only the first F rows of the slab carry weight.  F % 8 == 0
    # keeps this a free, sublane-aligned static slice of the ref.
    h = jnp.dot(h, w[:F, 0:P], preferred_element_type=jnp.float32) + b[:, 0:P]
    for l in range(1, n_layers):
        # ReLU in fp32, cast once for the next (possibly bf16) MXU pass.
        # Dropout(p=0.2) is identity in eval mode.
        h = jnp.maximum(h, 0.0).astype(wdt)
        h = (jnp.dot(h, w[:, l * P:(l + 1) * P],
                     preferred_element_type=jnp.float32)
             + b[:, l * P:(l + 1) * P])
    return h


def _mlp_kernel(x_ref, w_ref, b_ref, o_ref):
    o_ref[...] = _packed_mlp_fwd(x_ref, w_ref, b_ref).astype(o_ref.dtype)


def prepare_packed_params(params, weight_dtype=jnp.bfloat16):
    """Zero-pad every layer to (128, 128) and pack into one weight slab + one bias row.

    bf16 weight storage is the default (single-pass MXU on v5e, half the
    resident-weight DMA everywhere); pass weight_dtype=jnp.float32 for exact
    eval-mode semantics of the PyTorch module.
    """
    n = len(params)
    w_slab = jnp.zeros((P, n * P), dtype=weight_dtype)
    b_slab = jnp.zeros((1, n * P), dtype=jnp.float32)
    for l, (w, b) in enumerate(params):
        fan_in, fan_out = w.shape
        w_slab = w_slab.at[:fan_in, l * P:l * P + fan_out].set(w.astype(weight_dtype))
        b_slab = b_slab.at[:, l * P:l * P + fan_out].set(
            b.reshape(1, -1).astype(jnp.float32))
    return w_slab, b_slab


def net_forward(x, w_slab, b_slab, action_count, *,
                batch_tile=1024, min_grid_steps=8, jnp_below=64,
                out_dtype=jnp.float32, return_padded=False):
    """Fused MLP forward.  Returns (B, action_count) (or (B, 128) if return_padded)."""
    B, F = x.shape

    if B < jnp_below:
        # Tiny batch: a pallas_call is pure launch/DMA latency here; plain jnp
        # on the same packed slab is equivalent and cheaper.
        out = _packed_mlp_fwd(x, w_slab, b_slab).astype(out_dtype)
    elif B <= batch_tile:
        # One fused, fully VMEM-resident block.  No grid: grid steps would be
        # pure per-step overhead for a problem this small.
        vmem = pl.BlockSpec(memory_space=pltpu.MemorySpace.VMEM)
        out = pl.pallas_call(
            _mlp_kernel,
            out_shape=jax.ShapeDtypeStruct((B, P), out_dtype),
            in_specs=[vmem, vmem, vmem],
            out_specs=vmem,
        )(x, w_slab, b_slab)
    else:
        # 1-D batch grid over the ORIGINAL array (no materialized batch pad);
        # Pallas handles the partial tail tile (rows are independent and the
        # out-of-range ones are never written back).  Weights/bias use a
        # constant index_map, so they stay VMEM-resident across grid steps.
        tb = batch_tile
        while tb > 256 and pl.cdiv(B, tb) < min_grid_steps:
            tb //= 2  # keep >= min_grid_steps steps (>= 4 per TC on v7x)
        out = pl.pallas_call(
            _mlp_kernel,
            out_shape=jax.ShapeDtypeStruct((B, P), out_dtype),
            grid_spec=pltpu.PrefetchScalarGridSpec(
                num_scalar_prefetch=0,
                grid=(pl.cdiv(B, tb),),
                in_specs=[
                    pl.BlockSpec((tb, F), lambda i: (i, 0)),
                    pl.BlockSpec(w_slab.shape, lambda i: (0, 0)),  # resident
                    pl.BlockSpec(b_slab.shape, lambda i: (0, 0)),  # resident
                ],
                out_specs=pl.BlockSpec((tb, P), lambda i: (i, 0)),
            ),
            compiler_params=pltpu.CompilerParams(
                dimension_semantics=("parallel",)),  # shard batch over TCs (v7x)
        )(x, w_slab, b_slab)

    if return_padded:
        return out                       # (B, 128); columns >= action_count are zero
    return out[:, :action_count]


def init_params(key, observation_width, action_count):
    """Mimics nn.Linear init: uniform(+/- 1/sqrt(fan_in)); weights stored (in, out)."""
    span = action_count - observation_width
    connect_1_2 = int(span * 0.25 + observation_width)
    connect_2_3 = int(span * 0.5 + observation_width)
    connect_3_4 = int(span * 0.75 + observation_width)

    dims = [observation_width, connect_1_2, connect_2_3, connect_3_4, action_count]
    params = []
    for i in range(4):
        fan_in, fan_out = dims[i], dims[i + 1]
        key, kw, kb = jax.random.split(key, 3)
        bound = 1.0 / (fan_in ** 0.5)
        w = jax.random.uniform(kw, (fan_in, fan_out), jnp.float32, -bound, bound)
        b = jax.random.uniform(kb, (1, fan_out), jnp.float32, -bound, bound)
        params.append((w, b))
    return params


def reference_forward(x, params):
    """Pure-JAX fp32 reference (eval-mode: dropout is identity)."""
    h = x
    for i, (w, b) in enumerate(params):
        h = h @ w + b
        if i < 3:
            h = jnp.maximum(h, 0.0)
    return h


if __name__ == "__main__":
    observation_width = 32
    action_count = 64

    key = jax.random.PRNGKey(0)
    key, k_small, k_mid, k_big = jax.random.split(key, 4)
    params = init_params(key, observation_width, action_count)

    w32, b32 = prepare_packed_params(params, weight_dtype=jnp.float32)  # exact
    wbf, bbf = prepare_packed_params(params)                            # bf16 default

    # --- medium batch: single fused VMEM-resident kernel block, exact fp32 ---
    x_mid = jax.random.normal(k_mid, (128, observation_width), jnp.float32)
    out_mid = jax.block_until_ready(net_forward(x_mid, w32, b32, action_count))
    ref_mid = reference_forward(x_mid, params)
    assert out_mid.shape == (128, action_count), out_mid.shape
    assert jnp.allclose(out_mid, ref_mid, atol=1e-4, rtol=1e-4), "fp32 mismatch"

    # bf16 weight storage on the same kernel path (fp32 accumulation)
    out_mid_bf = jax.block_until_ready(net_forward(x_mid, wbf, bbf, action_count))
    assert out_mid_bf.shape == (128, action_count)
    assert jnp.allclose(out_mid_bf, ref_mid, atol=2e-1, rtol=1e-1), "bf16 mismatch"

    # --- tiny batch (B=8): jnp fallback path (kernel skipped per review) ---
    x_small = jax.random.normal(k_small, (8, observation_width), jnp.float32)
    out_small = jax.block_until_ready(net_forward(x_small, w32, b32, action_count))
    ref_small = reference_forward(x_small, params)
    assert out_small.shape == (8, action_count), out_small.shape
    assert jnp.allclose(out_small, ref_small, atol=1e-4, rtol=1e-4), "tiny-batch mismatch"

    # --- large batch, NOT a multiple of the tile: gridded kernel, masked tail ---
    x_big = jax.random.normal(k_big, (4100, observation_width), jnp.float32)
    out_big = jax.block_until_ready(net_forward(x_big, w32, b32, action_count))
    ref_big = reference_forward(x_big, params)
    assert out_big.shape == (4100, action_count), out_big.shape
    assert jnp.allclose(out_big, ref_big, atol=1e-4, rtol=1e-4), "gridded fp32 mismatch"

    print("KERNEL_OK")
</pallas_src>

<mosaic_0001>
module attributes {stable_mosaic.version = 11 : i64} {
  func.func @_mlp_kernel(%arg0: memref<128x32xf32, #tpu.memory_space<vmem>>, %arg1: memref<128x512xf32, #tpu.memory_space<vmem>>, %arg2: memref<1x512xf32, #tpu.memory_space<vmem>>, %arg3: memref<128x128xf32, #tpu.memory_space<vmem>>) attributes {dimension_semantics = [], scalar_prefetch = 0 : i64, scratch_operands = 0 : i64, tpu.core_type = #tpu.core_type<tc>} {
    %c0 = arith.constant 0 : index
    %c0_0 = arith.constant 0 : index
    %0 = vector.load %arg0[%c0, %c0_0] : memref<128x32xf32, #tpu.memory_space<vmem>>, vector<128x32xf32>
    %c0_1 = arith.constant 0 : index
    %c0_2 = arith.constant 0 : index
    %1 = vector.load %arg1[%c0_1, %c0_2] : memref<128x512xf32, #tpu.memory_space<vmem>>, vector<32x128xf32>
    %cst = arith.constant dense<0.000000e+00> : vector<128x128xf32>
    %2 = tpu.matmul %0, %1, %cst {dimension_numbers = #tpu.dot_dimension_numbers<[1], [0], [0], [1], [0, 0, 1, 1], [], []>} : vector<128x32xf32>, vector<32x128xf32>, vector<128x128xf32> -> vector<128x128xf32>
    %c0_3 = arith.constant 0 : index
    %c0_4 = arith.constant 0 : index
    %3 = vector.load %arg2[%c0_3, %c0_4] : memref<1x512xf32, #tpu.memory_space<vmem>>, vector<1x128xf32>
    %4 = vector.broadcast %3 : vector<1x128xf32> to vector<128x128xf32>
    %5 = arith.addf %2, %4 : vector<128x128xf32>
    %cst_5 = arith.constant 0.000000e+00 : f32
    %6 = vector.broadcast %cst_5 : f32 to vector<128x128xf32>
    %7 = arith.maximumf %5, %6 : vector<128x128xf32>
    %c0_6 = arith.constant 0 : index
    %c128 = arith.constant 128 : index
    %8 = vector.load %arg1[%c0_6, %c128] : memref<128x512xf32, #tpu.memory_space<vmem>>, vector<128x128xf32>
    %cst_7 = arith.constant dense<0.000000e+00> : vector<128x128xf32>
    %9 = tpu.matmul %7, %8, %cst_7 {dimension_numbers = #tpu.dot_dimension_numbers<[1], [0], [0], [1], [0, 0, 1, 1], [], []>} : vector<128x128xf32>, vector<128x128xf32>, vector<128x128xf32> -> vector<128x128xf32>
    %c0_8 = arith.constant 0 : index
    %c128_9 = arith.constant 128 : index
    %10 = vector.load %arg2[%c0_8, %c128_9] : memref<1x512xf32, #tpu.memory_space<vmem>>, vector<1x128xf32>
    %11 = vector.broadcast %10 : vector<1x128xf32> to vector<128x128xf32>
    %12 = arith.addf %9, %11 : vector<128x128xf32>
    %cst_10 = arith.constant 0.000000e+00 : f32
    %13 = vector.broadcast %cst_10 : f32 to vector<128x128xf32>
    %14 = arith.maximumf %12, %13 : vector<128x128xf32>
    %c0_11 = arith.constant 0 : index
    %c256 = arith.constant 256 : index
    %15 = vector.load %arg1[%c0_11, %c256] : memref<128x512xf32, #tpu.memory_space<vmem>>, vector<128x128xf32>
    %cst_12 = arith.constant dense<0.000000e+00> : vector<128x128xf32>
    %16 = tpu.matmul %14, %15, %cst_12 {dimension_numbers = #tpu.dot_dimension_numbers<[1], [0], [0], [1], [0, 0, 1, 1], [], []>} : vector<128x128xf32>, vector<128x128xf32>, vector<128x128xf32> -> vector<128x128xf32>
    %c0_13 = arith.constant 0 : index
    %c256_14 = arith.constant 256 : index
    %17 = vector.load %arg2[%c0_13, %c256_14] : memref<1x512xf32, #tpu.memory_space<vmem>>, vector<1x128xf32>
    %18 = vector.broadcast %17 : vector<1x128xf32> to vector<128x128xf32>
    %19 = arith.addf %16, %18 : vector<128x128xf32>
    %cst_15 = arith.constant 0.000000e+00 : f32
    %20 = vector.broadcast %cst_15 : f32 to vector<128x128xf32>
    %21 = arith.maximumf %19, %20 : vector<128x128xf32>
    %c0_16 = arith.constant 0 : index
    %c384 = arith.constant 384 : index
    %22 = vector.load %arg1[%c0_16, %c384] : memref<128x512xf32, #tpu.memory_space<vmem>>, vector<128x128xf32>
    %cst_17 = arith.constant dense<0.000000e+00> : vector<128x128xf32>
    %23 = tpu.matmul %21, %22, %cst_17 {dimension_numbers = #tpu.dot_dimension_numbers<[1], [0], [0], [1], [0, 0, 1, 1], [], []>} : vector<128x128xf32>, vector<128x128xf32>, vector<128x128xf32> -> vector<128x128xf32>
    %c0_18 = arith.constant 0 : index
    %c384_19 = arith.constant 384 : index
    %24 = vector.load %arg2[%c0_18, %c384_19] : memref<1x512xf32, #tpu.memory_space<vmem>>, vector<1x128xf32>
    %25 = vector.broadcast %24 : vector<1x128xf32> to vector<128x128xf32>
    %26 = arith.addf %23, %25 : vector<128x128xf32>
    %c0_20 = arith.constant 0 : index
    %c0_21 = arith.constant 0 : index
    %27 = vector.load %arg3[%c0_20, %c0_21] : memref<128x128xf32, #tpu.memory_space<vmem>>, vector<128x128xf32>
    tpu.vector_store %arg3[%c0_20, %c0_21], %26 {strides = array<i32>} : memref<128x128xf32, #tpu.memory_space<vmem>>, vector<128x128xf32>,
    return
  }
}

</mosaic_0001>

<llo_original>
// kernel: tpu_custom_call.1
$region0: #{tpu_custom_call.1}
  #allocation0 [shape = 'u32[]', space=smem, size = 0x4, offset = 0x4, fixed_abs, tag = 'smem constant byte address 0x4 - core index']
  #allocation1 [shape = 'u32[144,128]{1,0:T(1,128)}', space=vmem, size = 0x12000, scoped, tag = 'internal scratch']
  %s0 = inlined_call_operand.vmem [shape: f32[128,32], index: 0, kind: input, shape index: {}]
  %s1 = inlined_call_operand.hbm [shape: f32[128,512], index: 1, kind: input, shape index: {}]
  %s2 = inlined_call_operand.vmem [shape: f32[1,512], index: 2, kind: input, shape index: {}]
  %s3 = inlined_call_operand.hbm [shape: f32[128,128], index: 3, kind: output, shape index: {}]
  %s4 = sld [smem:[#allocation0]]
  $region26: #{tpu_custom_call.1} parent=0
    _
  %s6 = ssub.s32 1, %s4
  %s7 = scalar_select 0, %s6, %s4
  $region1: #{tpu_custom_call.1} parent=0
    #allocation2 [shape = 'u8[262144]{0}', space=vmem, size = 0x40000, scoped, tag = 'input window, operand 1, single buffered']
    #allocation3 [shape = 's32[1]{0}', space=sflag, size = 0x4, scoped, tag = 'scoped memory for tpu_custom_call.1']
    #allocation4 [shape = 's32[1]{0}', space=sflag, size = 0x4, scoped, tag = 'scoped memory for tpu_custom_call.1']
    #allocation5 [shape = 'u8[65536]{0}', space=vmem, size = 0x10000, scoped, tag = 'output window, operand 0, single buffered']
    %8 = vsyncpa [#allocation3], 0
    %9 = vsyncpa [#allocation4], 0
    // Predicated region
    $region2: #{tpu_custom_call.1} parent=1 // pred_check
      _
    $region3: #{tpu_custom_call.1} parent=1 // pred_check_branch
      %11 = sbr.rel (0) target = $region5
    $region4: #{tpu_custom_call.1} parent=1 // pred_region
      _
    $region5: #{tpu_custom_call.1} parent=1 // pred_fallthru
      _
    // Predicated region
    $region6: #{tpu_custom_call.1} parent=1 // pred_check
      _
    $region7: #{tpu_custom_call.1} parent=1 // pred_check_branch
      %13 = sbr.rel (0) target = $region9
    $region8: #{tpu_custom_call.1} parent=1 // pred_region
      %s15 = ssub.s32 8192, 8192
      %16 = vsyncadd [#allocation3], %s15
      %s17 = sshll.u32 [#allocation2], 4
      %s18 = int_to_ptr.vmem [resolvable:$true] %s17
      %23 = dma.hbm_to_vmem [thread:$0]  %s1, 8192, %s18, [#allocation3], 512, 512, 32
    $region9: #{tpu_custom_call.1} parent=1 // pred_fallthru
      _
    // Predicated region
    $region10: #{tpu_custom_call.1} parent=1 // pred_check
      _
    $region11: #{tpu_custom_call.1} parent=1 // pred_check_branch
      %25 = sbr.rel (0) target = $region13
    $region12: #{tpu_custom_call.1} parent=1 // pred_region
      _
    $region13: #{tpu_custom_call.1} parent=1 // pred_fallthru
      _
    // Predicated region
    $region14: #{tpu_custom_call.1} parent=1 // pred_check
      _
    $region15: #{tpu_custom_call.1} parent=1 // pred_check_branch
      %27 = sbr.rel (0) target = $region17
    $region16: #{tpu_custom_call.1} parent=1 // pred_region
      %28 = dma.done [#allocation3], 8192
    $region17: #{tpu_custom_call.1} parent=1 // pred_fallthru
      _
    %v29 = vld [vmem:[%s0] sm:$0xff]
    %v30 = vld [vmem:[%s0 + $0x8] sm:$0xff]
    %v31 = vld [vmem:[%s0 + $0x10] sm:$0xff]
    %v32 = vld [vmem:[%s0 + $0x18] sm:$0xff]
    %v33 = vld [vmem:[%s0 + $0x20] sm:$0xff]
    %v34 = vld [vmem:[%s0 + $0x28] sm:$0xff]
    %v35 = vld [vmem:[%s0 + $0x30] sm:$0xff]
    %v36 = vld [vmem:[%s0 + $0x38] sm:$0xff]
    %v37 = vld [vmem:[%s0 + $0x40] sm:$0xff]
    %v38 = vld [vmem:[%s0 + $0x48] sm:$0xff]
    %v39 = vld [vmem:[%s0 + $0x50] sm:$0xff]
    %v40 = vld [vmem:[%s0 + $0x58] sm:$0xff]
    %v41 = vld [vmem:[%s0 + $0x60] sm:$0xff]
    %v42 = vld [vmem:[%s0 + $0x68] sm:$0xff]
    %v43 = vld [vmem:[%s0 + $0x70] sm:$0xff]
    %v44 = vld [vmem:[%s0 + $0x78] sm:$0xff]
    %v45 = vld [vmem:[#allocation2] sm:$0xff]
    %v46 = vld [vmem:[#allocation2 + $0x20] sm:$0xff]
    %v47 = vld [vmem:[#allocation2 + $0x40] sm:$0xff]
    %v48 = vld [vmem:[#allocation2 + $0x60] sm:$0xff]
    %v49 = vld [vmem:[%s2] sm:$0x1]
    %v51 = vlaneseq
    %v52 = vshrl.u32 %v51, 7
    %v53 = vsub.s32 0, %v52
    %v54 = vrot.slane %v49, %v53
    %vm56 = vcmask 261120
    %v58 = vsel %vm56, %v29, 0
    %v61 = vsel %vm56, %v30, 0
    %v64 = vsel %vm56, %v31, 0
    %v67 = vsel %vm56, %v32, 0
    %v70 = vsel %vm56, %v33, 0
    %v73 = vsel %vm56, %v34, 0
    %v76 = vsel %vm56, %v35, 0
    %v79 = vsel %vm56, %v36, 0
    %v82 = vsel %vm56, %v37, 0
    %v85 = vsel %vm56, %v38, 0
    %v88 = vsel %vm56, %v39, 0
    %v91 = vsel %vm56, %v40, 0
    %v94 = vsel %vm56, %v41, 0
    %v97 = vsel %vm56, %v42, 0
    %v100 = vsel %vm56, %v43, 0
    %v103 = vsel %vm56, %v44, 0
    %105 = vmatprep.subr.mxu0 0.0
    %106 = vmatpush1.msra.mxu0 0.0
    %107 = vmatprep.subr.mxu0 0.0
    %108 = vmatpush1.msra.mxu0 0.0
    %109 = vmatprep.subr.mxu0 0.0
    %110 = vmatpush1.msra.mxu0 0.0
    %111 = vmatprep.subr.mxu0 0.0
    %112 = vmatpush1.msra.mxu0 0.0
    %113 = vmatprep.subr.mxu0 0.0
    %114 = vmatpush1.msra.mxu0 0.0
    %115 = vmatprep.subr.mxu0 0.0
    %116 = vmatpush1.msra.mxu0 0.0
    %117 = vmatprep.subr.mxu0 0.0
    %118 = vmatpush1.msra.mxu0 0.0
    %119 = vmatprep.subr.mxu0 0.0
    %120 = vmatpush1.msra.mxu0 0.0
    %121 = vmatprep.subr.mxu0 0.0
    %122 = vmatpush1.msra.mxu0 0.0
    %123 = vmatprep.subr.mxu0 0.0
    %124 = vmatpush1.msra.mxu0 0.0
    %125 = vmatprep.subr.mxu0 0.0
    %126 = vmatpush1.msra.mxu0 0.0
    %127 = vmatprep.subr.mxu0 0.0
    %128 = vmatpush1.msra.mxu0 0.0
    %129 = vmatprep.subr.mxu0 0.0
    %130 = vmatpush1.msra.mxu0 %v48
    %131 = vmatprep.subr.mxu0 0.0
    %132 = vmatpush1.msra.mxu0 %v47
    %133 = vmatprep.subr.mxu0 0.0
    %134 = vmatpush1.msra.mxu0 %v46
    %135 = vmatprep.subr.mxu0 0.0
    %136 = vmatpush1.msra.mxu0 %v45
    %137 = vmatprep.subr.mxu0 0.0
    %138 = vmatpush2.msra.mxu0 0.0
    %139 = vmatprep.subr.mxu0 0.0
    %140 = vmatpush2.msra.mxu0 0.0
    %141 = vmatprep.subr.mxu0 0.0
    %142 = vmatpush2.msra.mxu0 0.0
    %143 = vmatprep.subr.mxu0 0.0
    %144 = vmatpush2.msra.mxu0 0.0
    %145 = vmatprep.subr.mxu0 0.0
    %146 = vmatpush2.msra.mxu0 0.0
    %147 = vmatprep.subr.mxu0 0.0
    %148 = vmatpush2.msra.mxu0 0.0
    %149 = vmatprep.subr.mxu0 0.0
    %150 = vmatpush2.msra.mxu0 0.0
    %151 = vmatprep.subr.mxu0 0.0
    %152 = vmatpush2.msra.mxu0 0.0
    %153 = vmatprep.subr.mxu0 0.0
    %154 = vmatpush2.msra.mxu0 0.0
    %155 = vmatprep.subr.mxu0 0.0
    %156 = vmatpush2.msra.mxu0 0.0
    %157 = vmatprep.subr.mxu0 0.0
    %158 = vmatpush2.msra.mxu0 0.0
    %159 = vmatprep.subr.mxu0 0.0
    %160 = vmatpush2.msra.mxu0 0.0
    %161 = vmatprep.subr.mxu0 0.0
    %162 = vmatpush2.msra.mxu0 0.0
    %163 = vmatprep.subr.mxu0 0.0
    %164 = vmatpush2.msra.mxu0 0.0
    %165 = vmatprep.subr.mxu0 0.0
    %166 = vmatpush2.msra.mxu0 0.0
    %167 = vmatprep.subr.mxu0 0.0
    %168 = vmatpush2.msra.mxu0 0.0
    %169 = vmatprep.mubr.f32.mxu0 0.0
    %170 = vmatmul.mubr.f32.gmra.mxu0 %v58
    %v171 = vpop.f32.mrf.mxu0
    %v172 = vadd.f32 %v54, %v171
    %v173 = vpop.f32.mrf.mxu0
    %174 = vmatprep.mubr.f32.mxu0 0.0
    %175 = vmatmul.mubr.f32.gmra.mxu0 %v61
    %v176 = vpop.f32.mrf.mxu0
    %v177 = vadd.f32 %v54, %v176
    %v178 = vpop.f32.mrf.mxu0
    %179 = vmatprep.mubr.f32.mxu0 0.0
    %180 = vmatmul.mubr.f32.gmra.mxu0 %v64
    %v181 = vpop.f32.mrf.mxu0
    %v182 = vadd.f32 %v54, %v181
    %v183 = vpop.f32.mrf.mxu0
    %184 = vmatprep.mubr.f32.mxu0 0.0
    %185 = vmatmul.mubr.f32.gmra.mxu0 %v67
    %v186 = vpop.f32.mrf.mxu0
    %v187 = vadd.f32 %v54, %v186
    %v188 = vpop.f32.mrf.mxu0
    %189 = vmatprep.mubr.f32.mxu0 0.0
    %190 = vmatmul.mubr.f32.gmra.mxu0 %v70
    %v191 = vpop.f32.mrf.mxu0
    %v192 = vadd.f32 %v54, %v191
    %v193 = vpop.f32.mrf.mxu0
    %194 = vmatprep.mubr.f32.mxu0 0.0
    %195 = vmatmul.mubr.f32.gmra.mxu0 %v73
    %v196 = vpop.f32.mrf.mxu0
    %v197 = vadd.f32 %v54, %v196
    %v198 = vpop.f32.mrf.mxu0
    %199 = vmatprep.mubr.f32.mxu0 0.0
    %200 = vmatmul.mubr.f32.gmra.mxu0 %v76
    %v201 = vpop.f32.mrf.mxu0
    %v202 = vadd.f32 %v54, %v201
    %v203 = vpop.f32.mrf.mxu0
    %204 = vmatprep.mubr.f32.mxu0 0.0
    %205 = vmatmul.mubr.f32.gmra.mxu0 %v79
    %v206 = vpop.f32.mrf.mxu0
    %v207 = vadd.f32 %v54, %v206
    %v208 = vpop.f32.mrf.mxu0
    %209 = vmatprep.mubr.f32.mxu0 0.0
    %210 = vmatmul.mubr.f32.gmra.mxu0 %v82
    %v211 = vpop.f32.mrf.mxu0
    %v212 = vadd.f32 %v54, %v211
    %v213 = vpop.f32.mrf.mxu0
    %214 = vmatprep.mubr.f32.mxu0 0.0
    %215 = vmatmul.mubr.f32.gmra.mxu0 %v85
    %v216 = vpop.f32.mrf.mxu0
    %v217 = vadd.f32 %v54, %v216
    %v218 = vpop.f32.mrf.mxu0
    %219 = vmatprep.mubr.f32.mxu0 0.0
    %220 = vmatmul.mubr.f32.gmra.mxu0 %v88
    %v221 = vpop.f32.mrf.mxu0
    %v222 = vadd.f32 %v54, %v221
    %v223 = vpop.f32.mrf.mxu0
    %224 = vmatprep.mubr.f32.mxu0 0.0
    %225 = vmatmul.mubr.f32.gmra.mxu0 %v91
    %v226 = vpop.f32.mrf.mxu0
    %v227 = vadd.f32 %v54, %v226
    %v228 = vpop.f32.mrf.mxu0
    %229 = vmatprep.mubr.f32.mxu0 0.0
    %230 = vmatmul.mubr.f32.gmra.mxu0 %v94
    %v231 = vpop.f32.mrf.mxu0
    %v232 = vadd.f32 %v54, %v231
    %v233 = vpop.f32.mrf.mxu0
    %234 = vmatprep.mubr.f32.mxu0 0.0
    %235 = vmatmul.mubr.f32.gmra.mxu0 %v97
    %v236 = vpop.f32.mrf.mxu0
    %v237 = vadd.f32 %v54, %v236
    %v238 = vpop.f32.mrf.mxu0
    %239 = vmatprep.mubr.f32.mxu0 0.0
    %240 = vmatmul.mubr.f32.gmra.mxu0 %v100
    %v241 = vpop.f32.mrf.mxu0
    %v242 = vadd.f32 %v54, %v241
    %v243 = vpop.f32.mrf.mxu0
    %244 = vmatprep.mubr.f32.mxu0 0.0
    %245 = vmatmul.mubr.f32.gmra.mxu0 %v103
    %v246 = vpop.f32.mrf.mxu0
    %v247 = vadd.f32 %v54, %v246
    %v248 = vpop.f32.mrf.mxu0
    %249 = vdwg.mxu0
    %v250 = vmax.f32 %v172, 0.0
    %v251 = vmax.f32 %v177, 0.0
    %v252 = vmax.f32 %v182, 0.0
    %v253 = vmax.f32 %v187, 0.0
    %v254 = vmax.f32 %v192, 0.0
    %v255 = vmax.f32 %v197, 0.0
    %v256 = vmax.f32 %v202, 0.0
    %v257 = vmax.f32 %v207, 0.0
    %v258 = vmax.f32 %v212, 0.0
    %v259 = vmax.f32 %v217, 0.0
    %v260 = vmax.f32 %v222, 0.0
    %v261 = vmax.f32 %v227, 0.0
    %v262 = vmax.f32 %v232, 0.0
    %v263 = vmax.f32 %v237, 0.0
    %v264 = vmax.f32 %v242, 0.0
    %v265 = vmax.f32 %v247, 0.0
    %v266 = vld [vmem:[#allocation2 + $0x8] sm:$0xff]
    %v267 = vld [vmem:[#allocation2 + $0x28] sm:$0xff]
    %v268 = vld [vmem:[#allocation2 + $0x48] sm:$0xff]
    %v269 = vld [vmem:[#allocation2 + $0x68] sm:$0xff]
    %v270 = vld [vmem:[#allocation2 + $0x88] sm:$0xff]
    %v271 = vld [vmem:[#allocation2 + $0xa8] sm:$0xff]
    %v272 = vld [vmem:[#allocation2 + $0xc8] sm:$0xff]
    %v273 = vld [vmem:[#allocation2 + $0xe8] sm:$0xff]
    %v274 = vld [vmem:[#allocation2 + $0x108] sm:$0xff]
    %v275 = vld [vmem:[#allocation2 + $0x128] sm:$0xff]
    %v276 = vld [vmem:[#allocation2 + $0x148] sm:$0xff]
    %v277 = vld [vmem:[#allocation2 + $0x168] sm:$0xff]
    %v278 = vld [vmem:[#allocation2 + $0x188] sm:$0xff]
    %v279 = vld [vmem:[#allocation2 + $0x1a8] sm:$0xff]
    %v280 = vld [vmem:[#allocation2 + $0x1c8] sm:$0xff]
    %v281 = vld [vmem:[#allocation2 + $0x1e8] sm:$0xff]
    %v282 = vld [vmem:[%s2 + $0x1] sm:$0x1]
    %v284 = vlaneseq
    %v285 = vshrl.u32 %v284, 7
    %v286 = vsub.s32 0, %v285
    %v287 = vrot.slane %v282, %v286
    %289 = vmatprep.subr.mxu0 0.0
    %290 = vmatpush1.msra.mxu0 %v281
    %291 = vmatprep.subr.mxu0 0.0
    %292 = vmatpush1.msra.mxu0 %v280
    %293 = vmatprep.subr.mxu0 0.0
    %294 = vmatpush1.msra.mxu0 %v279
    %295 = vmatprep.subr.mxu0 0.0
    %296 = vmatpush1.msra.mxu0 %v278
    %297 = vmatprep.subr.mxu0 0.0
    %298 = vmatpush1.msra.mxu0 %v277
    %299 = vmatprep.subr.mxu0 0.0
    %300 = vmatpush1.msra.mxu0 %v276
    %301 = vmatprep.subr.mxu0 0.0
    %302 = vmatpush1.msra.mxu0 %v275
    %303 = vmatprep.subr.mxu0 0.0
    %304 = vmatpush1.msra.mxu0 %v274
    %305 = vmatprep.subr.mxu0 0.0
    %306 = vmatpush1.msra.mxu0 %v273
    %307 = vmatprep.subr.mxu0 0.0
    %308 = vmatpush1.msra.mxu0 %v272
    %309 = vmatprep.subr.mxu0 0.0
    %310 = vmatpush1.msra.mxu0 %v271
    %311 = vmatprep.subr.mxu0 0.0
    %312 = vmatpush1.msra.mxu0 %v270
    %313 = vmatprep.subr.mxu0 0.0
    %314 = vmatpush1.msra.mxu0 %v269
    %315 = vmatprep.subr.mxu0 0.0
    %316 = vmatpush1.msra.mxu0 %v268
    %317 = vmatprep.subr.mxu0 0.0
    %318 = vmatpush1.msra.mxu0 %v267
    %319 = vmatprep.subr.mxu0 0.0
    %320 = vmatpush1.msra.mxu0 %v266
    %321 = vmatprep.subr.mxu0 0.0
    %322 = vmatpush2.msra.mxu0 0.0
    %323 = vmatprep.subr.mxu0 0.0
    %324 = vmatpush2.msra.mxu0 0.0
    %325 = vmatprep.subr.mxu0 0.0
    %326 = vmatpush2.msra.mxu0 0.0
    %327 = vmatprep.subr.mxu0 0.0
    %328 = vmatpush2.msra.mxu0 0.0
    %329 = vmatprep.subr.mxu0 0.0
    %330 = vmatpush2.msra.mxu0 0.0
    %331 = vmatprep.subr.mxu0 0.0
    %332 = vmatpush2.msra.mxu0 0.0
    %333 = vmatprep.subr.mxu0 0.0
    %334 = vmatpush2.msra.mxu0 0.0
    %335 = vmatprep.subr.mxu0 0.0
    %336 = vmatpush2.msra.mxu0 0.0
    %337 = vmatprep.subr.mxu0 0.0
    %338 = vmatpush2.msra.mxu0 0.0
    %339 = vmatprep.subr.mxu0 0.0
    %340 = vmatpush2.msra.mxu0 0.0
    %341 = vmatprep.subr.mxu0 0.0
    %342 = vmatpush2.msra.mxu0 0.0
    %343 = vmatprep.subr.mxu0 0.0
    %344 = vmatpush2.msra.mxu0 0.0
    %345 = vmatprep.subr.mxu0 0.0
    %346 = vmatpush2.msra.mxu0 0.0
    %347 = vmatprep.subr.mxu0 0.0
    %348 = vmatpush2.msra.mxu0 0.0
    %349 = vmatprep.subr.mxu0 0.0
    %350 = vmatpush2.msra.mxu0 0.0
    %351 = vmatprep.subr.mxu0 0.0
    %352 = vmatpush2.msra.mxu0 0.0
    %353 = vmatprep.mubr.f32.mxu0 0.0
    %354 = vmatmul.mubr.f32.gmra.mxu0 %v250
    %v355 = vpop.f32.mrf.mxu0
    %v356 = vadd.f32 %v287, %v355
    %v357 = vpop.f32.mrf.mxu0
    %358 = vmatprep.mubr.f32.mxu0 0.0
    %359 = vmatmul.mubr.f32.gmra.mxu0 %v251
    %v360 = vpop.f32.mrf.mxu0
    %v361 = vadd.f32 %v287, %v360
    %v362 = vpop.f32.mrf.mxu0
    %363 = vmatprep.mubr.f32.mxu0 0.0
    %364 = vmatmul.mubr.f32.gmra.mxu0 %v252
    %v365 = vpop.f32.mrf.mxu0
    %v366 = vadd.f32 %v287, %v365
    %v367 = vpop.f32.mrf.mxu0
    %368 = vmatprep.mubr.f32.mxu0 0.0
    %369 = vmatmul.mubr.f32.gmra.mxu0 %v253
    %v370 = vpop.f32.mrf.mxu0
    %v371 = vadd.f32 %v287, %v370
    %v372 = vpop.f32.mrf.mxu0
    %373 = vmatprep.mubr.f32.mxu0 0.0
    %374 = vmatmul.mubr.f32.gmra.mxu0 %v254
    %v375 = vpop.f32.mrf.mxu0
    %v376 = vadd.f32 %v287, %v375
    %v377 = vpop.f32.mrf.mxu0
    %378 = vmatprep.mubr.f32.mxu0 0.0
    %379 = vmatmul.mubr.f32.gmra.mxu0 %v255
    %v380 = vpop.f32.mrf.mxu0
    %v381 = vadd.f32 %v287, %v380
    %v382 = vpop.f32.mrf.mxu0
    %383 = vmatprep.mubr.f32.mxu0 0.0
    %384 = vmatmul.mubr.f32.gmra.mxu0 %v256
    %v385 = vpop.f32.mrf.mxu0
    %v386 = vadd.f32 %v287, %v385
    %v387 = vpop.f32.mrf.mxu0
    %388 = vmatprep.mubr.f32.mxu0 0.0
    %389 = vmatmul.mubr.f32.gmra.mxu0 %v257
    %v390 = vpop.f32.mrf.mxu0
    %v391 = vadd.f32 %v287, %v390
    %v392 = vpop.f32.mrf.mxu0
    %393 = vmatprep.mubr.f32.mxu0 0.0
    %394 = vmatmul.mubr.f32.gmra.mxu0 %v258
    %v395 = vpop.f32.mrf.mxu0
    %v396 = vadd.f32 %v287, %v395
    %v397 = vpop.f32.mrf.mxu0
    %398 = vmatprep.mubr.f32.mxu0 0.0
    %399 = vmatmul.mubr.f32.gmra.mxu0 %v259
    %v400 = vpop.f32.mrf.mxu0
    %v401 = vadd.f32 %v287, %v400
    %v402 = vpop.f32.mrf.mxu0
    %403 = vmatprep.mubr.f32.mxu0 0.0
    %404 = vmatmul.mubr.f32.gmra.mxu0 %v260
    %v405 = vpop.f32.mrf.mxu0
    %v406 = vadd.f32 %v287, %v405
    %v407 = vpop.f32.mrf.mxu0
    %408 = vmatprep.mubr.f32.mxu0 0.0
    %409 = vmatmul.mubr.f32.gmra.mxu0 %v261
    %v410 = vpop.f32.mrf.mxu0
    %v411 = vadd.f32 %v287, %v410
    %v412 = vpop.f32.mrf.mxu0
    %413 = vmatprep.mubr.f32.mxu0 0.0
    %414 = vmatmul.mubr.f32.gmra.mxu0 %v262
    %v415 = vpop.f32.mrf.mxu0
    %v416 = vadd.f32 %v287, %v415
    %v417 = vpop.f32.mrf.mxu0
    %418 = vmatprep.mubr.f32.mxu0 0.0
    %419 = vmatmul.mubr.f32.gmra.mxu0 %v263
    %v420 = vpop.f32.mrf.mxu0
    %v421 = vadd.f32 %v287, %v420
    %v422 = vpop.f32.mrf.mxu0
    %423 = vmatprep.mubr.f32.mxu0 0.0
    %424 = vmatmul.mubr.f32.gmra.mxu0 %v264
    %v425 = vpop.f32.mrf.mxu0
    %v426 = vadd.f32 %v287, %v425
    %v427 = vpop.f32.mrf.mxu0
    %428 = vmatprep.mubr.f32.mxu0 0.0
    %429 = vmatmul.mubr.f32.gmra.mxu0 %v265
    %v430 = vpop.f32.mrf.mxu0
    %v431 = vadd.f32 %v287, %v430
    %v432 = vpop.f32.mrf.mxu0
    %433 = vdwg.mxu0
    %v434 = vmax.f32 %v356, 0.0
    %v435 = vmax.f32 %v361, 0.0
    %v436 = vmax.f32 %v366, 0.0
    %v437 = vmax.f32 %v371, 0.0
    %v438 = vmax.f32 %v376, 0.0
    %v439 = vmax.f32 %v381, 0.0
    %v440 = vmax.f32 %v386, 0.0
    %v441 = vmax.f32 %v391, 0.0
    %v442 = vmax.f32 %v396, 0.0
    %v443 = vmax.f32 %v401, 0.0
    %v444 = vmax.f32 %v406, 0.0
    %v445 = vmax.f32 %v411, 0.0
    %v446 = vmax.f32 %v416, 0.0
    %v447 = vmax.f32 %v421, 0.0
    %v448 = vmax.f32 %v426, 0.0
    %v449 = vmax.f32 %v431, 0.0
    %v450 = vld [vmem:[#allocation2 + $0x10] sm:$0xff]
    %v451 = vld [vmem:[#allocation2 + $0x30] sm:$0xff]
    %v452 = vld [vmem:[#allocation2 + $0x50] sm:$0xff]
    %v453 = vld [vmem:[#allocation2 + $0x70] sm:$0xff]
    %v454 = vld [vmem:[#allocation2 + $0x90] sm:$0xff]
    %v455 = vld [vmem:[#allocation2 + $0xb0] sm:$0xff]
    %v456 = vld [vmem:[#allocation2 + $0xd0] sm:$0xff]
    %v457 = vld [vmem:[#allocation2 + $0xf0] sm:$0xff]
    %v458 = vld [vmem:[#allocation2 + $0x110] sm:$0xff]
    %v459 = vld [vmem:[#allocation2 + $0x130] sm:$0xff]
    %v460 = vld [vmem:[#allocation2 + $0x150] sm:$0xff]
    %v461 = vld [vmem:[#allocation2 + $0x170] sm:$0xff]
    %v462 = vld [vmem:[#allocation2 + $0x190] sm:$0xff]
    %v463 = vld [vmem:[#allocation2 + $0x1b0] sm:$0xff]
    %v464 = vld [vmem:[#allocation2 + $0x1d0] sm:$0xff]
    %v465 = vld [vmem:[#allocation2 + $0x1f0] sm:$0xff]
    %v466 = vld [vmem:[%s2 + $0x2] sm:$0x1]
    %v468 = vlaneseq
    %v469 = vshrl.u32 %v468, 7
    %v470 = vsub.s32 0, %v469
    %v471 = vrot.slane %v466, %v470
    %473 = vmatprep.subr.mxu0 0.0
    %474 = vmatpush1.msra.mxu0 %v465
    %475 = vmatprep.subr.mxu0 0.0
    %476 = vmatpush1.msra.mxu0 %v464
    %477 = vmatprep.subr.mxu0 0.0
    %478 = vmatpush1.msra.mxu0 %v463
    %479 = vmatprep.subr.mxu0 0.0
    %480 = vmatpush1.msra.mxu0 %v462
    %481 = vmatprep.subr.mxu0 0.0
    %482 = vmatpush1.msra.mxu0 %v461
    %483 = vmatprep.subr.mxu0 0.0
    %484 = vmatpush1.msra.mxu0 %v460
    %485 = vmatprep.subr.mxu0 0.0
    %486 = vmatpush1.msra.mxu0 %v459
    %487 = vmatprep.subr.mxu0 0.0
    %488 = vmatpush1.msra.mxu0 %v458
    %489 = vmatprep.subr.mxu0 0.0
    %490 = vmatpush1.msra.mxu0 %v457
    %491 = vmatprep.subr.mxu0 0.0
    %492 = vmatpush1.msra.mxu0 %v456
    %493 = vmatprep.subr.mxu0 0.0
    %494 = vmatpush1.msra.mxu0 %v455
    %495 = vmatprep.subr.mxu0 0.0
    %496 = vmatpush1.msra.mxu0 %v454
    %497 = vmatprep.subr.mxu0 0.0
    %498 = vmatpush1.msra.mxu0 %v453
    %499 = vmatprep.subr.mxu0 0.0
    %500 = vmatpush1.msra.mxu0 %v452
    %501 = vmatprep.subr.mxu0 0.0
    %502 = vmatpush1.msra.mxu0 %v451
    %503 = vmatprep.subr.mxu0 0.0
    %504 = vmatpush1.msra.mxu0 %v450
    %505 = vmatprep.subr.mxu0 0.0
    %506 = vmatpush2.msra.mxu0 0.0
    %507 = vmatprep.subr.mxu0 0.0
    %508 = vmatpush2.msra.mxu0 0.0
    %509 = vmatprep.subr.mxu0 0.0
    %510 = vmatpush2.msra.mxu0 0.0
    %511 = vmatprep.subr.mxu0 0.0
    %512 = vmatpush2.msra.mxu0 0.0
    %513 = vmatprep.subr.mxu0 0.0
    %514 = vmatpush2.msra.mxu0 0.0
    %515 = vmatprep.subr.mxu0 0.0
    %516 = vmatpush2.msra.mxu0 0.0
    %517 = vmatprep.subr.mxu0 0.0
    %518 = vmatpush2.msra.mxu0 0.0
    %519 = vmatprep.subr.mxu0 0.0
    %520 = vmatpush2.msra.mxu0 0.0
    %521 = vmatprep.subr.mxu0 0.0
    %522 = vmatpush2.msra.mxu0 0.0
    %523 = vmatprep.subr.mxu0 0.0
    %524 = vmatpush2.msra.mxu0 0.0
    %525 = vmatprep.subr.mxu0 0.0
    %526 = vmatpush2.msra.mxu0 0.0
    %527 = vmatprep.subr.mxu0 0.0
    %528 = vmatpush2.msra.mxu0 0.0
    %529 = vmatprep.subr.mxu0 0.0
    %530 = vmatpush2.msra.mxu0 0.0
    %531 = vmatprep.subr.mxu0 0.0
    %532 = vmatpush2.msra.mxu0 0.0
    %533 = vmatprep.subr.mxu0 0.0
    %534 = vmatpush2.msra.mxu0 0.0
    %535 = vmatprep.subr.mxu0 0.0
    %536 = vmatpush2.msra.mxu0 0.0
    %537 = vmatprep.mubr.f32.mxu0 0.0
    %538 = vmatmul.mubr.f32.gmra.mxu0 %v434
    %v539 = vpop.f32.mrf.mxu0
    %v540 = vadd.f32 %v471, %v539
    %v541 = vpop.f32.mrf.mxu0
    %542 = vmatprep.mubr.f32.mxu0 0.0
    %543 = vmatmul.mubr.f32.gmra.mxu0 %v435
    %v544 = vpop.f32.mrf.mxu0
    %v545 = vadd.f32 %v471, %v544
    %v546 = vpop.f32.mrf.mxu0
    %547 = vmatprep.mubr.f32.mxu0 0.0
    %548 = vmatmul.mubr.f32.gmra.mxu0 %v436
    %v549 = vpop.f32.mrf.mxu0
    %v550 = vadd.f32 %v471, %v549
    %v551 = vpop.f32.mrf.mxu0
    %552 = vmatprep.mubr.f32.mxu0 0.0
    %553 = vmatmul.mubr.f32.gmra.mxu0 %v437
    %v554 = vpop.f32.mrf.mxu0
    %v555 = vadd.f32 %v471, %v554
    %v556 = vpop.f32.mrf.mxu0
    %557 = vmatprep.mubr.f32.mxu0 0.0
    %558 = vmatmul.mubr.f32.gmra.mxu0 %v438
    %v559 = vpop.f32.mrf.mxu0
    %v560 = vadd.f32 %v471, %v559
    %v561 = vpop.f32.mrf.mxu0
    %562 = vmatprep.mubr.f32.mxu0 0.0
    %563 = vmatmul.mubr.f32.gmra.mxu0 %v439
    %v564 = vpop.f32.mrf.mxu0
    %v565 = vadd.f32 %v471, %v564
    %v566 = vpop.f32.mrf.mxu0
    %567 = vmatprep.mubr.f32.mxu0 0.0
    %568 = vmatmul.mubr.f32.gmra.mxu0 %v440
    %v569 = vpop.f32.mrf.mxu0
    %v570 = vadd.f32 %v471, %v569
    %v571 = vpop.f32.mrf.mxu0
    %572 = vmatprep.mubr.f32.mxu0 0.0
    %573 = vmatmul.mubr.f32.gmra.mxu0 %v441
    %v574 = vpop.f32.mrf.mxu0
    %v575 = vadd.f32 %v471, %v574
    %v576 = vpop.f32.mrf.mxu0
    %577 = vmatprep.mubr.f32.mxu0 0.0
    %578 = vmatmul.mubr.f32.gmra.mxu0 %v442
    %v579 = vpop.f32.mrf.mxu0
    %v580 = vadd.f32 %v471, %v579
    %v581 = vpop.f32.mrf.mxu0
    %582 = vmatprep.mubr.f32.mxu0 0.0
    %583 = vmatmul.mubr.f32.gmra.mxu0 %v443
    %v584 = vpop.f32.mrf.mxu0
    %v585 = vadd.f32 %v471, %v584
    %v586 = vpop.f32.mrf.mxu0
    %587 = vmatprep.mubr.f32.mxu0 0.0
    %588 = vmatmul.mubr.f32.gmra.mxu0 %v444
    %v589 = vpop.f32.mrf.mxu0
    %v590 = vadd.f32 %v471, %v589
    %v591 = vpop.f32.mrf.mxu0
    %592 = vmatprep.mubr.f32.mxu0 0.0
    %593 = vmatmul.mubr.f32.gmra.mxu0 %v445
    %v594 = vpop.f32.mrf.mxu0
    %v595 = vadd.f32 %v471, %v594
    %v596 = vpop.f32.mrf.mxu0
    %597 = vmatprep.mubr.f32.mxu0 0.0
    %598 = vmatmul.mubr.f32.gmra.mxu0 %v446
    %v599 = vpop.f32.mrf.mxu0
    %v600 = vadd.f32 %v471, %v599
    %v601 = vpop.f32.mrf.mxu0
    %602 = vmatprep.mubr.f32.mxu0 0.0
    %603 = vmatmul.mubr.f32.gmra.mxu0 %v447
    %v604 = vpop.f32.mrf.mxu0
    %v605 = vadd.f32 %v471, %v604
    %v606 = vpop.f32.mrf.mxu0
    %607 = vmatprep.mubr.f32.mxu0 0.0
    %608 = vmatmul.mubr.f32.gmra.mxu0 %v448
    %v609 = vpop.f32.mrf.mxu0
    %v610 = vadd.f32 %v471, %v609
    %v611 = vpop.f32.mrf.mxu0
    %612 = vmatprep.mubr.f32.mxu0 0.0
    %613 = vmatmul.mubr.f32.gmra.mxu0 %v449
    %v614 = vpop.f32.mrf.mxu0
    %v615 = vadd.f32 %v471, %v614
    %v616 = vpop.f32.mrf.mxu0
    %617 = vdwg.mxu0
    %v618 = vmax.f32 %v540, 0.0
    %v619 = vmax.f32 %v545, 0.0
    %v620 = vmax.f32 %v550, 0.0
    %v621 = vmax.f32 %v555, 0.0
    %v622 = vmax.f32 %v560, 0.0
    %v623 = vmax.f32 %v565, 0.0
    %v624 = vmax.f32 %v570, 0.0
    %v625 = vmax.f32 %v575, 0.0
    %v626 = vmax.f32 %v580, 0.0
    %v627 = vmax.f32 %v585, 0.0
    %v628 = vmax.f32 %v590, 0.0
    %v629 = vmax.f32 %v595, 0.0
    %v630 = vmax.f32 %v600, 0.0
    %v631 = vmax.f32 %v605, 0.0
    %v632 = vmax.f32 %v610, 0.0
    %v633 = vmax.f32 %v615, 0.0
    %v634 = vld [vmem:[#allocation2 + $0x18] sm:$0xff]
    %v635 = vld [vmem:[#allocation2 + $0x38] sm:$0xff]
    %v636 = vld [vmem:[#allocation2 + $0x58] sm:$0xff]
    %v637 = vld [vmem:[#allocation2 + $0x78] sm:$0xff]
    %v638 = vld [vmem:[#allocation2 + $0x98] sm:$0xff]
    %v639 = vld [vmem:[#allocation2 + $0xb8] sm:$0xff]
    %v640 = vld [vmem:[#allocation2 + $0xd8] sm:$0xff]
    %v641 = vld [vmem:[#allocation2 + $0xf8] sm:$0xff]
    %v642 = vld [vmem:[#allocation2 + $0x118] sm:$0xff]
    %v643 = vld [vmem:[#allocation2 + $0x138] sm:$0xff]
    %v644 = vld [vmem:[#allocation2 + $0x158] sm:$0xff]
    %v645 = vld [vmem:[#allocation2 + $0x178] sm:$0xff]
    %v646 = vld [vmem:[#allocation2 + $0x198] sm:$0xff]
    %v647 = vld [vmem:[#allocation2 + $0x1b8] sm:$0xff]
    %v648 = vld [vmem:[#allocation2 + $0x1d8] sm:$0xff]
    %v649 = vld [vmem:[#allocation2 + $0x1f8] sm:$0xff]
    %v650 = vld [vmem:[%s2 + $0x3] sm:$0x1]
    %v652 = vlaneseq
    %v653 = vshrl.u32 %v652, 7
    %v654 = vsub.s32 0, %v653
    %v655 = vrot.slane %v650, %v654
    %657 = vmatprep.subr.mxu0 0.0
    %658 = vmatpush1.msra.mxu0 %v649
    %659 = vmatprep.subr.mxu0 0.0
    %660 = vmatpush1.msra.mxu0 %v648
    %661 = vmatprep.subr.mxu0 0.0
    %662 = vmatpush1.msra.mxu0 %v647
    %663 = vmatprep.subr.mxu0 0.0
    %664 = vmatpush1.msra.mxu0 %v646
    %665 = vmatprep.subr.mxu0 0.0
    %666 = vmatpush1.msra.mxu0 %v645
    %667 = vmatprep.subr.mxu0 0.0
    %668 = vmatpush1.msra.mxu0 %v644
    %669 = vmatprep.subr.mxu0 0.0
    %670 = vmatpush1.msra.mxu0 %v643
    %671 = vmatprep.subr.mxu0 0.0
    %672 = vmatpush1.msra.mxu0 %v642
    %673 = vmatprep.subr.mxu0 0.0
    %674 = vmatpush1.msra.mxu0 %v641
    %675 = vmatprep.subr.mxu0 0.0
    %676 = vmatpush1.msra.mxu0 %v640
    %677 = vmatprep.subr.mxu0 0.0
    %678 = vmatpush1.msra.mxu0 %v639
    %679 = vmatprep.subr.mxu0 0.0
    %680 = vmatpush1.msra.mxu0 %v638
    %681 = vmatprep.subr.mxu0 0.0
    %682 = vmatpush1.msra.mxu0 %v637
    %683 = vmatprep.subr.mxu0 0.0
    %684 = vmatpush1.msra.mxu0 %v636
    %685 = vmatprep.subr.mxu0 0.0
    %686 = vmatpush1.msra.mxu0 %v635
    %687 = vmatprep.subr.mxu0 0.0
    %688 = vmatpush1.msra.mxu0 %v634
    %689 = vmatprep.subr.mxu0 0.0
    %690 = vmatpush2.msra.mxu0 0.0
    %691 = vmatprep.subr.mxu0 0.0
    %692 = vmatpush2.msra.mxu0 0.0
    %693 = vmatprep.subr.mxu0 0.0
    %694 = vmatpush2.msra.mxu0 0.0
    %695 = vmatprep.subr.mxu0 0.0
    %696 = vmatpush2.msra.mxu0 0.0
    %697 = vmatprep.subr.mxu0 0.0
    %698 = vmatpush2.msra.mxu0 0.0
    %699 = vmatprep.subr.mxu0 0.0
    %700 = vmatpush2.msra.mxu0 0.0
    %701 = vmatprep.subr.mxu0 0.0
    %702 = vmatpush2.msra.mxu0 0.0
    %703 = vmatprep.subr.mxu0 0.0
    %704 = vmatpush2.msra.mxu0 0.0
    %705 = vmatprep.subr.mxu0 0.0
    %706 = vmatpush2.msra.mxu0 0.0
    %707 = vmatprep.subr.mxu0 0.0
    %708 = vmatpush2.msra.mxu0 0.0
    %709 = vmatprep.subr.mxu0 0.0
    %710 = vmatpush2.msra.mxu0 0.0
    %711 = vmatprep.subr.mxu0 0.0
    %712 = vmatpush2.msra.mxu0 0.0
    %713 = vmatprep.subr.mxu0 0.0
    %714 = vmatpush2.msra.mxu0 0.0
    %715 = vmatprep.subr.mxu0 0.0
    %716 = vmatpush2.msra.mxu0 0.0
    %717 = vmatprep.subr.mxu0 0.0
    %718 = vmatpush2.msra.mxu0 0.0
    %719 = vmatprep.subr.mxu0 0.0
    %720 = vmatpush2.msra.mxu0 0.0
    %721 = vmatprep.mubr.f32.mxu0 0.0
    %722 = vmatmul.mubr.f32.gmra.mxu0 %v618
    %v723 = vpop.f32.mrf.mxu0
    %v724 = vadd.f32 %v655, %v723
    %v725 = vpop.f32.mrf.mxu0
    %726 = vmatprep.mubr.f32.mxu0 0.0
    %727 = vmatmul.mubr.f32.gmra.mxu0 %v619
    %v728 = vpop.f32.mrf.mxu0
    %v729 = vadd.f32 %v655, %v728
    %v730 = vpop.f32.mrf.mxu0
    %731 = vmatprep.mubr.f32.mxu0 0.0
    %732 = vmatmul.mubr.f32.gmra.mxu0 %v620
    %v733 = vpop.f32.mrf.mxu0
    %v734 = vadd.f32 %v655, %v733
    %v735 = vpop.f32.mrf.mxu0
    %736 = vmatprep.mubr.f32.mxu0 0.0
    %737 = vmatmul.mubr.f32.gmra.mxu0 %v621
    %v738 = vpop.f32.mrf.mxu0
    %v739 = vadd.f32 %v655, %v738
    %v740 = vpop.f32.mrf.mxu0
    %741 = vmatprep.mubr.f32.mxu0 0.0
    %742 = vmatmul.mubr.f32.gmra.mxu0 %v622
    %v743 = vpop.f32.mrf.mxu0
    %v744 = vadd.f32 %v655, %v743
    %v745 = vpop.f32.mrf.mxu0
    %746 = vmatprep.mubr.f32.mxu0 0.0
    %747 = vmatmul.mubr.f32.gmra.mxu0 %v623
    %v748 = vpop.f32.mrf.mxu0
    %v749 = vadd.f32 %v655, %v748
    %v750 = vpop.f32.mrf.mxu0
    %751 = vmatprep.mubr.f32.mxu0 0.0
    %752 = vmatmul.mubr.f32.gmra.mxu0 %v624
    %v753 = vpop.f32.mrf.mxu0
    %v754 = vadd.f32 %v655, %v753
    %v755 = vpop.f32.mrf.mxu0
    %756 = vmatprep.mubr.f32.mxu0 0.0
    %757 = vmatmul.mubr.f32.gmra.mxu0 %v625
    %v758 = vpop.f32.mrf.mxu0
    %v759 = vadd.f32 %v655, %v758
    %v760 = vpop.f32.mrf.mxu0
    %761 = vmatprep.mubr.f32.mxu0 0.0
    %762 = vmatmul.mubr.f32.gmra.mxu0 %v626
    %v763 = vpop.f32.mrf.mxu0
    %v764 = vadd.f32 %v655, %v763
    %v765 = vpop.f32.mrf.mxu0
    %766 = vmatprep.mubr.f32.mxu0 0.0
    %767 = vmatmul.mubr.f32.gmra.mxu0 %v627
    %v768 = vpop.f32.mrf.mxu0
    %v769 = vadd.f32 %v655, %v768
    %v770 = vpop.f32.mrf.mxu0
    %771 = vmatprep.mubr.f32.mxu0 0.0
    %772 = vmatmul.mubr.f32.gmra.mxu0 %v628
    %v773 = vpop.f32.mrf.mxu0
    %v774 = vadd.f32 %v655, %v773
    %v775 = vpop.f32.mrf.mxu0
    %776 = vmatprep.mubr.f32.mxu0 0.0
    %777 = vmatmul.mubr.f32.gmra.mxu0 %v629
    %v778 = vpop.f32.mrf.mxu0
    %v779 = vadd.f32 %v655, %v778
    %v780 = vpop.f32.mrf.mxu0
    %781 = vmatprep.mubr.f32.mxu0 0.0
    %782 = vmatmul.mubr.f32.gmra.mxu0 %v630
    %v783 = vpop.f32.mrf.mxu0
    %v784 = vadd.f32 %v655, %v783
    %v785 = vpop.f32.mrf.mxu0
    %786 = vmatprep.mubr.f32.mxu0 0.0
    %787 = vmatmul.mubr.f32.gmra.mxu0 %v631
    %v788 = vpop.f32.mrf.mxu0
    %v789 = vadd.f32 %v655, %v788
    %v790 = vpop.f32.mrf.mxu0
    %791 = vmatprep.mubr.f32.mxu0 0.0
    %792 = vmatmul.mubr.f32.gmra.mxu0 %v632
    %v793 = vpop.f32.mrf.mxu0
    %v794 = vadd.f32 %v655, %v793
    %v795 = vpop.f32.mrf.mxu0
    %796 = vmatprep.mubr.f32.mxu0 0.0
    %797 = vmatmul.mubr.f32.gmra.mxu0 %v633
    %v798 = vpop.f32.mrf.mxu0
    %v799 = vadd.f32 %v655, %v798
    %v800 = vpop.f32.mrf.mxu0
    %801 = vdwg.mxu0
    %802 = vst [vmem:[#allocation5] sm:$0xff] %v724
    %803 = vst [vmem:[#allocation5 + $0x8] sm:$0xff] %v729
    %804 = vst [vmem:[#allocation5 + $0x10] sm:$0xff] %v734
    %805 = vst [vmem:[#allocation5 + $0x18] sm:$0xff] %v739
    %806 = vst [vmem:[#allocation5 + $0x20] sm:$0xff] %v744
    %807 = vst [vmem:[#allocation5 + $0x28] sm:$0xff] %v749
    %808 = vst [vmem:[#allocation5 + $0x30] sm:$0xff] %v754
    %809 = vst [vmem:[#allocation5 + $0x38] sm:$0xff] %v759
    %810 = vst [vmem:[#allocation5 + $0x40] sm:$0xff] %v764
    %811 = vst [vmem:[#allocation5 + $0x48] sm:$0xff] %v769
    %812 = vst [vmem:[#allocation5 + $0x50] sm:$0xff] %v774
    %813 = vst [vmem:[#allocation5 + $0x58] sm:$0xff] %v779
    %814 = vst [vmem:[#allocation5 + $0x60] sm:$0xff] %v784
    %815 = vst [vmem:[#allocation5 + $0x68] sm:$0xff] %v789
    %816 = vst [vmem:[#allocation5 + $0x70] sm:$0xff] %v794
    %817 = vst [vmem:[#allocation5 + $0x78] sm:$0xff] %v799
    // Predicated region
    $region18: #{tpu_custom_call.1} parent=1 // pred_check
      _
    $region19: #{tpu_custom_call.1} parent=1 // pred_check_branch
      %819 = sbr.rel (0) target = $region21
    $region20: #{tpu_custom_call.1} parent=1 // pred_region
      %s821 = ssub.s32 2048, 2048
      %822 = vsyncadd [#allocation4], %s821
      %s823 = sshll.u32 [#allocation5], 4
      %s824 = int_to_ptr.vmem [resolvable:$true] %s823
      %829 = dma.vmem_to_hbm [thread:$0]  %s824, 2048, %s3, [#allocation4], 128, 128, 8
    $region21: #{tpu_custom_call.1} parent=1 // pred_fallthru
      _
    // Predicated region
    $region22: #{tpu_custom_call.1} parent=1 // pred_check
      _
    $region23: #{tpu_custom_call.1} parent=1 // pred_check_branch
      %831 = sbr.rel (0) target = $region25
    $region24: #{tpu_custom_call.1} parent=1 // pred_region
      %832 = dma.done [#allocation4], 2048
    $region25: #{tpu_custom_call.1} parent=1 // pred_fallthru
      _
    %833 = vsyncpa [#allocation3], 1
    %834 = vsyncpa [#allocation4], 1

</llo_original>
